<compile_context>
chip_gen: v7x
topology: tpu7x:2x2x1
jax: 0.10.0
libtpu: 0.0.40
codegen_flags: <defaults>
</compile_context>

<pallas_src>
import numpy as np
import jax
import jax.numpy as jnp
from jax.experimental import pallas as pl
from jax.experimental.pallas import tpu as pltpu

LOG2PI = float(np.log(2.0 * np.pi))


def _round_up(x, m):
    return ((x + m - 1) // m) * m


def _zif_stats_kernel(rho_ref, tgt_ref, q_ref, mean_ref, tt_ref, ld_ref,
                      inv_psi_ref, cpsi_ref, rhs_ref, out_ref):
    rho = rho_ref[0, 0]
    log_rho = rho_ref[0, 1]

    t = tgt_ref[...]          # (TB, N)
    q = q_ref[...]            # (TB, N)
    mu = mean_ref[...]        # (TB, N)
    tt = tt_ref[...]          # (TB, N)
    ld = ld_ref[...]          # (TB, N)
    inv_psi = inv_psi_ref[...]  # (1, N), broadcasts over sublanes

    g_mask = t >= rho                            # gaussian (non-zero-inflated) lanes
    gm = g_mask.astype(jnp.float32)

    # uniform part: sum_{i: t<rho} (log1p(-q_i) - log(rho))
    uniform_lp = jnp.sum(
        jnp.where(g_mask, 0.0, jnp.log1p(-q) - log_rho), axis=-1, keepdims=True)

    # masked residual in transformed space (masked via where: no 0*inf)
    delta = jnp.where(g_mask, tt - mu, 0.0)

    s_d2psi = jnp.sum(delta * delta * inv_psi, axis=-1, keepdims=True)
    s_jac = jnp.sum(jnp.where(g_mask, ld, 0.0), axis=-1, keepdims=True)
    s_logq = jnp.sum(jnp.where(g_mask, jnp.log(q), 0.0), axis=-1, keepdims=True)

    # u_j      = sum_i C[j,i] * delta_i / psi_i          -> (TB, R)     (MXU)
    u = jnp.dot(delta, cpsi_ref[...], preferred_element_type=jnp.float32)
    # [M_jk | sum log psi | n_b] = gm @ [P | log_psi | 1] -> (TB, R*R+2) (MXU)
    mstats = jnp.dot(gm, rhs_ref[...], preferred_element_type=jnp.float32)

    row = jnp.concatenate([uniform_lp, s_d2psi, s_jac, s_logq, u, mstats], axis=-1)
    pad_w = out_ref.shape[-1] - row.shape[-1]
    pad = jnp.zeros((row.shape[0], pad_w), jnp.float32)
    out_ref[...] = jnp.concatenate([row, pad], axis=-1)   # single lane-dense store


def zif_loglikelihood(sample_transform, targets, rho, qs, means, C, psi_diag):
    """JAX/Pallas port of ZIF_Loglikelihood.forward (returns per-sample loglikelihood)."""
    B, N = targets.shape
    d = C.shape[0]
    used = 4 + d + d * d + 2
    OUT_W = 128
    assert used <= OUT_W, "low-rank dimension too large for packed stats row"

    gaussian_masks = targets >= rho
    transformed_targets, logdets = sample_transform(targets, mask=gaussian_masks)

    # ---- sample-invariant precompute (hoisted out of the kernel) ----
    psi = psi_diag.astype(jnp.float32)
    inv_psi = 1.0 / psi                                           # (N,)
    log_psi = jnp.log(psi)                                        # (N,)
    Cn = C.astype(jnp.float32)                                    # (d, N)
    cpsi = (Cn * inv_psi[None, :]).T                              # (N, d)   = C^T / psi
    P = (Cn[:, None, :] * Cn[None, :, :]) * inv_psi[None, None, :]  # (d, d, N)
    P_flat = P.reshape(d * d, N).T                                # (N, d*d)
    rhs = jnp.concatenate(
        [P_flat, log_psi[:, None], jnp.ones((N, 1), jnp.float32)], axis=1)  # (N, d*d+2)
    inv_psi2 = inv_psi.reshape(1, N)

    rho_arr = jnp.array([[rho, float(np.log(rho))]], dtype=jnp.float32)

    # ---- batch padding / tile choice ----
    TB = min(128, _round_up(B, 8))
    B_pad = _round_up(B, TB)

    def pad_rows(x, value):
        x = x.astype(jnp.float32)
        if B_pad == B:
            return x
        return jnp.pad(x, ((0, B_pad - B), (0, 0)), constant_values=value)

    tgt_p = pad_rows(targets, 0.0)
    qs_p = pad_rows(qs, 0.5)
    mean_p = pad_rows(means, 0.0)
    tt_p = pad_rows(transformed_targets, 0.0)
    ld_p = pad_rows(logdets, 0.0)

    grid = (B_pad // TB,)

    out = pl.pallas_call(
        _zif_stats_kernel,
        out_shape=jax.ShapeDtypeStruct((B_pad, OUT_W), jnp.float32),
        grid=grid,
        in_specs=[
            pl.BlockSpec(memory_space=pltpu.MemorySpace.SMEM),       # [rho, log(rho)]
            pl.BlockSpec((TB, N), lambda b: (b, 0)),                 # targets
            pl.BlockSpec((TB, N), lambda b: (b, 0)),                 # qs
            pl.BlockSpec((TB, N), lambda b: (b, 0)),                 # means
            pl.BlockSpec((TB, N), lambda b: (b, 0)),                 # transformed targets
            pl.BlockSpec((TB, N), lambda b: (b, 0)),                 # logdets
            pl.BlockSpec((1, N), lambda b: (0, 0)),                  # 1/psi
            pl.BlockSpec((N, d), lambda b: (0, 0)),                  # C^T/psi
            pl.BlockSpec((N, d * d + 2), lambda b: (0, 0)),          # [P | log_psi | 1]
        ],
        out_specs=pl.BlockSpec((TB, OUT_W), lambda b: (b, 0)),
        compiler_params=pltpu.CompilerParams(
            dimension_semantics=("parallel",)),
    )(rho_arr, tgt_p, qs_p, mean_p, tt_p, ld_p, inv_psi2, cpsi, rhs)

    stats = out[:B]
    uniform_lp = stats[:, 0]
    s_d2psi = stats[:, 1]
    s_jac = stats[:, 2]
    s_logq = stats[:, 3]
    u = stats[:, 4:4 + d]                                         # (B, d)
    M = stats[:, 4 + d:4 + d + d * d].reshape(B, d, d)            # (B, d, d)
    s_logpsi = stats[:, 4 + d + d * d]
    n_b = stats[:, 4 + d + d * d + 1]

    # TODO(synk): the tiny (RANK x RANK) capacitance logdet/solve of
    # LowRankMultivariateNormal stays in plain JAX glue (data-independent size).
    A = jnp.eye(d, dtype=jnp.float32)[None, :, :] + M             # I + C D^-1 C^T (masked)
    _, logdet_cap = jnp.linalg.slogdet(A)
    x = jnp.linalg.solve(A, u[..., None])[..., 0]
    uAu = jnp.sum(u * x, axis=-1)

    # Woodbury / matrix-determinant lemma:
    #   logdet(Sigma) = sum log psi + logdet(I + C D^-1 C^T)
    #   maha          = sum d^2/psi - u^T (I + C D^-1 C^T)^-1 u
    gaussian_lp = -0.5 * (n_b * LOG2PI + s_logpsi + logdet_cap + s_d2psi - uAu)
    return uniform_lp + gaussian_lp + s_jac + s_logq


def _reference_numpy(targets, rho, qs, means, C, psi_diag, scale, shift):
    t = np.asarray(targets, np.float64)
    q = np.asarray(qs, np.float64)
    mu = np.asarray(means, np.float64)
    Cn = np.asarray(C, np.float64)
    psi = np.asarray(psi_diag, np.float64)
    sc = np.asarray(scale, np.float64)
    sh = np.asarray(shift, np.float64)
    B, _ = t.shape
    out = []
    for b in range(B):
        gm = t[b] >= rho
        um = ~gm
        ulp = np.sum((np.log(1.0 - q[b]) - np.log(rho)) * um)
        tt = sc * t[b] + sh
        ld = np.log(sc)
        x = tt[gm]
        m = mu[b][gm]
        W = Cn[:, gm].T                      # cov_factor (n_b, d)
        D = psi[gm]
        Sigma = W @ W.T + np.diag(D)
        diff = x - m
        _, logdet = np.linalg.slogdet(Sigma)
        maha = diff @ np.linalg.solve(Sigma, diff)
        glp = -0.5 * (gm.sum() * np.log(2.0 * np.pi) + logdet + maha)
        out.append(ulp + glp + ld[gm].sum() + np.log(q[b][gm]).sum())
    return np.array(out)


if __name__ == "__main__":
    key = jax.random.PRNGKey(0)
    B, N, RANK = 4, 128, 4
    rho = 0.5

    k = jax.random.split(key, 8)
    targets = jax.random.uniform(k[0], (B, N), jnp.float32, 0.0, 2.0)
    qs = jax.nn.sigmoid(jax.random.normal(k[1], (B, N), dtype=jnp.float32))
    means = jax.random.normal(k[2], (B, N), dtype=jnp.float32)
    C = 0.3 * jax.random.normal(k[3], (RANK, N), dtype=jnp.float32)
    psi_diag = 0.2 + jax.random.uniform(k[4], (N,), jnp.float32)
    scale = 0.5 + jax.random.uniform(k[5], (N,), jnp.float32)     # elementwise-affine flow params
    shift = 0.1 * jax.random.normal(k[6], (N,), dtype=jnp.float32)

    def sample_transform(x, mask=None):
        # deterministic elementwise-affine "flow": y = a*x + b, logdet = log(a)
        y = scale[None, :] * x + shift[None, :]
        logdets = jnp.broadcast_to(jnp.log(scale)[None, :], x.shape)
        return y, logdets

    ll = zif_loglikelihood(sample_transform, targets, rho, qs, means, C, psi_diag)
    ll = jax.block_until_ready(ll)

    ref = _reference_numpy(targets, rho, qs, means, C, psi_diag, scale, shift)
    assert np.allclose(np.asarray(ll), ref, rtol=5e-3, atol=5e-3), (np.asarray(ll), ref)
    print("KERNEL_OK")
</pallas_src>

<mosaic_0001>
module attributes {stable_mosaic.version = 11 : i64} {
  func.func @_zif_stats_kernel(%arg0: i32, %arg1: memref<1x2xf32, #tpu.memory_space<smem>>, %arg2: memref<8x128xf32, #tpu.memory_space<vmem>>, %arg3: memref<8x128xf32, #tpu.memory_space<vmem>>, %arg4: memref<8x128xf32, #tpu.memory_space<vmem>>, %arg5: memref<8x128xf32, #tpu.memory_space<vmem>>, %arg6: memref<8x128xf32, #tpu.memory_space<vmem>>, %arg7: memref<1x128xf32, #tpu.memory_space<vmem>>, %arg8: memref<128x4xf32, #tpu.memory_space<vmem>>, %arg9: memref<128x18xf32, #tpu.memory_space<vmem>>, %arg10: memref<8x128xf32, #tpu.memory_space<vmem>>) attributes {dimension_semantics = [#tpu.dimension_semantics<parallel>], iteration_bounds = array<i64: 1>, scalar_prefetch = 0 : i64, scratch_operands = 0 : i64, tpu.core_type = #tpu.core_type<tc>, window_params = [{transform_indices = @transform_0, window_bounds = array<i64: 1, 2>}, {transform_indices = @transform_1, window_bounds = array<i64: 8, 128>}, {transform_indices = @transform_2, window_bounds = array<i64: 8, 128>}, {transform_indices = @transform_3, window_bounds = array<i64: 8, 128>}, {transform_indices = @transform_4, window_bounds = array<i64: 8, 128>}, {transform_indices = @transform_5, window_bounds = array<i64: 8, 128>}, {pipeline_mode = #tpu.pipeline_mode<synchronous>, transform_indices = @transform_6, window_bounds = array<i64: 1, 128>}, {pipeline_mode = #tpu.pipeline_mode<synchronous>, transform_indices = @transform_7, window_bounds = array<i64: 128, 4>}, {pipeline_mode = #tpu.pipeline_mode<synchronous>, transform_indices = @transform_8, window_bounds = array<i64: 128, 18>}, {transform_indices = @transform_9, window_bounds = array<i64: 8, 128>}]} {
    %c0 = arith.constant 0 : index
    %c0_0 = arith.constant 0 : index
    %0 = memref.load %arg1[%c0, %c0_0] : memref<1x2xf32, #tpu.memory_space<smem>>
    %c0_1 = arith.constant 0 : index
    %c1 = arith.constant 1 : index
    %1 = memref.load %arg1[%c0_1, %c1] : memref<1x2xf32, #tpu.memory_space<smem>>
    %c0_2 = arith.constant 0 : index
    %c0_3 = arith.constant 0 : index
    %2 = vector.load %arg2[%c0_2, %c0_3] : memref<8x128xf32, #tpu.memory_space<vmem>>, vector<8x128xf32>
    %c0_4 = arith.constant 0 : index
    %c0_5 = arith.constant 0 : index
    %3 = vector.load %arg3[%c0_4, %c0_5] : memref<8x128xf32, #tpu.memory_space<vmem>>, vector<8x128xf32>
    %c0_6 = arith.constant 0 : index
    %c0_7 = arith.constant 0 : index
    %4 = vector.load %arg4[%c0_6, %c0_7] : memref<8x128xf32, #tpu.memory_space<vmem>>, vector<8x128xf32>
    %c0_8 = arith.constant 0 : index
    %c0_9 = arith.constant 0 : index
    %5 = vector.load %arg5[%c0_8, %c0_9] : memref<8x128xf32, #tpu.memory_space<vmem>>, vector<8x128xf32>
    %c0_10 = arith.constant 0 : index
    %c0_11 = arith.constant 0 : index
    %6 = vector.load %arg6[%c0_10, %c0_11] : memref<8x128xf32, #tpu.memory_space<vmem>>, vector<8x128xf32>
    %c0_12 = arith.constant 0 : index
    %c0_13 = arith.constant 0 : index
    %7 = vector.load %arg7[%c0_12, %c0_13] : memref<1x128xf32, #tpu.memory_space<vmem>>, vector<1x128xf32>
    %8 = vector.broadcast %0 : f32 to vector<8x128xf32>
    %9 = arith.cmpf oge, %2, %8 : vector<8x128xf32>
    %10 = arith.extui %9 : vector<8x128xi1> to vector<8x128xi32>
    %11 = arith.sitofp %10 : vector<8x128xi32> to vector<8x128xf32>
    %cst = arith.constant 0.000000e+00 : f32
    %12 = vector.broadcast %cst : f32 to vector<8x128xf32>
    %13 = arith.subf %12, %3 : vector<8x128xf32>
    %14 = math.log1p %13 : vector<8x128xf32>
    %15 = vector.broadcast %1 : f32 to vector<8x128xf32>
    %16 = arith.subf %14, %15 : vector<8x128xf32>
    %cst_14 = arith.constant 0.000000e+00 : f32
    %17 = vector.broadcast %cst_14 : f32 to vector<8x128xf32>
    %18 = arith.select %9, %17, %16 : vector<8x128xi1>, vector<8x128xf32>
    %cst_15 = arith.constant dense<0.000000e+00> : vector<8xf32>
    %19 = vector.multi_reduction <add>, %18, %cst_15 [1] : vector<8x128xf32> to vector<8xf32>
    %20 = vector.shape_cast %19 : vector<8xf32> to vector<8x1xf32>
    %21 = arith.subf %5, %4 : vector<8x128xf32>
    %cst_16 = arith.constant 0.000000e+00 : f32
    %22 = vector.broadcast %cst_16 : f32 to vector<8x128xf32>
    %23 = arith.select %9, %21, %22 : vector<8x128xi1>, vector<8x128xf32>
    %24 = arith.mulf %23, %23 : vector<8x128xf32>
    %25 = vector.broadcast %7 : vector<1x128xf32> to vector<8x128xf32>
    %26 = arith.mulf %24, %25 : vector<8x128xf32>
    %cst_17 = arith.constant dense<0.000000e+00> : vector<8xf32>
    %27 = vector.multi_reduction <add>, %26, %cst_17 [1] : vector<8x128xf32> to vector<8xf32>
    %28 = vector.shape_cast %27 : vector<8xf32> to vector<8x1xf32>
    %cst_18 = arith.constant 0.000000e+00 : f32
    %29 = vector.broadcast %cst_18 : f32 to vector<8x128xf32>
    %30 = arith.select %9, %6, %29 : vector<8x128xi1>, vector<8x128xf32>
    %cst_19 = arith.constant dense<0.000000e+00> : vector<8xf32>
    %31 = vector.multi_reduction <add>, %30, %cst_19 [1] : vector<8x128xf32> to vector<8xf32>
    %32 = vector.shape_cast %31 : vector<8xf32> to vector<8x1xf32>
    %33 = math.log %3 : vector<8x128xf32>
    %cst_20 = arith.constant 0.000000e+00 : f32
    %34 = vector.broadcast %cst_20 : f32 to vector<8x128xf32>
    %35 = arith.select %9, %33, %34 : vector<8x128xi1>, vector<8x128xf32>
    %cst_21 = arith.constant dense<0.000000e+00> : vector<8xf32>
    %36 = vector.multi_reduction <add>, %35, %cst_21 [1] : vector<8x128xf32> to vector<8xf32>
    %37 = vector.shape_cast %36 : vector<8xf32> to vector<8x1xf32>
    %c0_22 = arith.constant 0 : index
    %c0_23 = arith.constant 0 : index
    %38 = vector.load %arg8[%c0_22, %c0_23] : memref<128x4xf32, #tpu.memory_space<vmem>>, vector<128x4xf32>
    %cst_24 = arith.constant dense<0.000000e+00> : vector<8x4xf32>
    %39 = tpu.matmul %23, %38, %cst_24 {dimension_numbers = #tpu.dot_dimension_numbers<[1], [0], [0], [1], [0, 0, 1, 1], [], []>} : vector<8x128xf32>, vector<128x4xf32>, vector<8x4xf32> -> vector<8x4xf32>
    %c0_25 = arith.constant 0 : index
    %c0_26 = arith.constant 0 : index
    %40 = vector.load %arg9[%c0_25, %c0_26] : memref<128x18xf32, #tpu.memory_space<vmem>>, vector<128x18xf32>
    %cst_27 = arith.constant dense<0.000000e+00> : vector<8x18xf32>
    %41 = tpu.matmul %11, %40, %cst_27 {dimension_numbers = #tpu.dot_dimension_numbers<[1], [0], [0], [1], [0, 0, 1, 1], [], []>} : vector<8x128xf32>, vector<128x18xf32>, vector<8x18xf32> -> vector<8x18xf32>
    %42 = tpu.concatenate %20, %28, %32, %37, %39, %41 in 1 : vector<8x1xf32>, vector<8x1xf32>, vector<8x1xf32>, vector<8x1xf32>, vector<8x4xf32>, vector<8x18xf32> -> vector<8x26xf32>
    %cst_28 = arith.constant 0.000000e+00 : f32
    %43 = vector.broadcast %cst_28 : f32 to vector<8x102xf32>
    %44 = tpu.concatenate %42, %43 in 1 : vector<8x26xf32>, vector<8x102xf32> -> vector<8x128xf32>
    %c0_29 = arith.constant 0 : index
    %c0_30 = arith.constant 0 : index
    %45 = vector.load %arg10[%c0_29, %c0_30] : memref<8x128xf32, #tpu.memory_space<vmem>>, vector<8x128xf32>
    tpu.vector_store %arg10[%c0_29, %c0_30], %44 {strides = array<i32>} : memref<8x128xf32, #tpu.memory_space<vmem>>, vector<8x128xf32>,
    return
  }
  func.func @transform_0(%arg0: i32) -> (i32, i32) {
    %c0_i32 = arith.constant 0 : i32
    %c0_i32_0 = arith.constant 0 : i32
    %c0_i32_1 = arith.constant 0 : i32
    return %c0_i32, %c0_i32_0 : i32, i32
  }
  func.func @transform_1(%arg0: i32) -> (i32, i32) {
    %c0_i32 = arith.constant 0 : i32
    %c0_i32_0 = arith.constant 0 : i32
    return %arg0, %c0_i32 : i32, i32
  }
  func.func @transform_2(%arg0: i32) -> (i32, i32) {
    %c0_i32 = arith.constant 0 : i32
    %c0_i32_0 = arith.constant 0 : i32
    return %arg0, %c0_i32 : i32, i32
  }
  func.func @transform_3(%arg0: i32) -> (i32, i32) {
    %c0_i32 = arith.constant 0 : i32
    %c0_i32_0 = arith.constant 0 : i32
    return %arg0, %c0_i32 : i32, i32
  }
  func.func @transform_4(%arg0: i32) -> (i32, i32) {
    %c0_i32 = arith.constant 0 : i32
    %c0_i32_0 = arith.constant 0 : i32
    return %arg0, %c0_i32 : i32, i32
  }
  func.func @transform_5(%arg0: i32) -> (i32, i32) {
    %c0_i32 = arith.constant 0 : i32
    %c0_i32_0 = arith.constant 0 : i32
    return %arg0, %c0_i32 : i32, i32
  }
  func.func @transform_6(%arg0: i32) -> (i32, i32) {
    %c0_i32 = arith.constant 0 : i32
    %c0_i32_0 = arith.constant 0 : i32
    %c0_i32_1 = arith.constant 0 : i32
    return %c0_i32, %c0_i32_0 : i32, i32
  }
  func.func @transform_7(%arg0: i32) -> (i32, i32) {
    %c0_i32 = arith.constant 0 : i32
    %c0_i32_0 = arith.constant 0 : i32
    %c0_i32_1 = arith.constant 0 : i32
    return %c0_i32, %c0_i32_0 : i32, i32
  }
  func.func @transform_8(%arg0: i32) -> (i32, i32) {
    %c0_i32 = arith.constant 0 : i32
    %c0_i32_0 = arith.constant 0 : i32
    %c0_i32_1 = arith.constant 0 : i32
    return %c0_i32, %c0_i32_0 : i32, i32
  }
  func.func @transform_9(%arg0: i32) -> (i32, i32) {
    %c0_i32 = arith.constant 0 : i32
    %c0_i32_0 = arith.constant 0 : i32
    return %arg0, %c0_i32 : i32, i32
  }
}

</mosaic_0001>

<llo_original>
// kernel: tpu_custom_call.1
$region0: #{tpu_custom_call.1}
  #allocation0 [shape = 'u32[]', space=smem, size = 0x4, offset = 0x4, fixed_abs, tag = 'smem constant byte address 0x4 - core index']
  #allocation1 [shape = 'u32[144,128]{1,0:T(1,128)}', space=vmem, size = 0x12000, scoped, tag = 'internal scratch']
  %s0 = inlined_call_operand.vmem [shape: f32[1,2], index: 0, kind: input, shape index: {}]
  %s1 = inlined_call_operand.vmem [shape: f32[8,128], index: 1, kind: input, shape index: {}]
  %s2 = inlined_call_operand.vmem [shape: f32[8,128], index: 2, kind: input, shape index: {}]
  %s3 = inlined_call_operand.vmem [shape: f32[8,128], index: 3, kind: input, shape index: {}]
  %s4 = inlined_call_operand.vmem [shape: f32[8,128], index: 4, kind: input, shape index: {}]
  %s5 = inlined_call_operand.vmem [shape: f32[8,128], index: 5, kind: input, shape index: {}]
  %s6 = inlined_call_operand.vmem [shape: f32[1,128], index: 6, kind: input, shape index: {}]
  %s7 = inlined_call_operand.vmem [shape: f32[128,4], index: 7, kind: input, shape index: {}]
  %s8 = inlined_call_operand.vmem [shape: f32[128,18], index: 8, kind: input, shape index: {}]
  %s9 = inlined_call_operand.hbm [shape: f32[8,128], index: 9, kind: output, shape index: {}]
  %s10 = sld [smem:[#allocation0]]
  $region50: #{tpu_custom_call.1} parent=0
    _
  %s12 = ssub.s32 1, %s10
  %s13 = scalar_select 0, %s12, %s10
  $region1: #{tpu_custom_call.1} parent=0
    #allocation2 [shape = 'u8[512]{0}', space=smem, size = 0x200, scoped, tag = 'input window, operand 0, single buffered']
    #allocation3 [shape = 's32[1]{0}', space=sflag, size = 0x4, scoped, tag = 'scoped memory for tpu_custom_call.1']
    #allocation4 [shape = 's32[1]{0}', space=sflag, size = 0x4, scoped, tag = 'scoped memory for tpu_custom_call.1']
    #allocation5 [shape = 'u8[4096]{0}', space=vmem, size = 0x1000, scoped, tag = 'output window, operand 0, single buffered']
    %14 = vsyncpa [#allocation4], 0
    %15 = vsyncpa [#allocation3], 0
    // Predicated region
    $region2: #{tpu_custom_call.1} parent=1 // pred_check
      _
    $region3: #{tpu_custom_call.1} parent=1 // pred_check_branch
      %17 = sbr.rel (0) target = $region5
    $region4: #{tpu_custom_call.1} parent=1 // pred_region
      %s19 = ssub.s32 16, 16
      %20 = vsyncadd [#allocation4], %s19
      %s22 = sshll.u32 %s0, 4
      %s23 = int_to_ptr.vmem [resolvable:$true] %s22
      %25 = dma.vmem_to_smem %s23, 16, [#allocation2], [#allocation4]
    $region5: #{tpu_custom_call.1} parent=1 // pred_fallthru
      _
    // Predicated region
    $region6: #{tpu_custom_call.1} parent=1 // pred_check
      _
    $region7: #{tpu_custom_call.1} parent=1 // pred_check_branch
      %27 = sbr.rel (0) target = $region9
    $region8: #{tpu_custom_call.1} parent=1 // pred_region
      _
    $region9: #{tpu_custom_call.1} parent=1 // pred_fallthru
      _
    // Predicated region
    $region10: #{tpu_custom_call.1} parent=1 // pred_check
      _
    $region11: #{tpu_custom_call.1} parent=1 // pred_check_branch
      %29 = sbr.rel (0) target = $region13
    $region12: #{tpu_custom_call.1} parent=1 // pred_region
      _
    $region13: #{tpu_custom_call.1} parent=1 // pred_fallthru
      _
    // Predicated region
    $region14: #{tpu_custom_call.1} parent=1 // pred_check
      _
    $region15: #{tpu_custom_call.1} parent=1 // pred_check_branch
      %31 = sbr.rel (0) target = $region17
    $region16: #{tpu_custom_call.1} parent=1 // pred_region
      _
    $region17: #{tpu_custom_call.1} parent=1 // pred_fallthru
      _
    // Predicated region
    $region18: #{tpu_custom_call.1} parent=1 // pred_check
      _
    $region19: #{tpu_custom_call.1} parent=1 // pred_check_branch
      %33 = sbr.rel (0) target = $region21
    $region20: #{tpu_custom_call.1} parent=1 // pred_region
      _
    $region21: #{tpu_custom_call.1} parent=1 // pred_fallthru
      _
    // Predicated region
    $region22: #{tpu_custom_call.1} parent=1 // pred_check
      _
    $region23: #{tpu_custom_call.1} parent=1 // pred_check_branch
      %35 = sbr.rel (0) target = $region25
    $region24: #{tpu_custom_call.1} parent=1 // pred_region
      _
    $region25: #{tpu_custom_call.1} parent=1 // pred_fallthru
      _
    // Predicated region
    $region26: #{tpu_custom_call.1} parent=1 // pred_check
      _
    $region27: #{tpu_custom_call.1} parent=1 // pred_check_branch
      %37 = sbr.rel (0) target = $region29
    $region28: #{tpu_custom_call.1} parent=1 // pred_region
      _
    $region29: #{tpu_custom_call.1} parent=1 // pred_fallthru
      _
    // Predicated region
    $region30: #{tpu_custom_call.1} parent=1 // pred_check
      _
    $region31: #{tpu_custom_call.1} parent=1 // pred_check_branch
      %39 = sbr.rel (0) target = $region33
    $region32: #{tpu_custom_call.1} parent=1 // pred_region
      _
    $region33: #{tpu_custom_call.1} parent=1 // pred_fallthru
      _
    // Predicated region
    $region34: #{tpu_custom_call.1} parent=1 // pred_check
      _
    $region35: #{tpu_custom_call.1} parent=1 // pred_check_branch
      %41 = sbr.rel (0) target = $region37
    $region36: #{tpu_custom_call.1} parent=1 // pred_region
      _
    $region37: #{tpu_custom_call.1} parent=1 // pred_fallthru
      _
    // Predicated region
    $region38: #{tpu_custom_call.1} parent=1 // pred_check
      _
    $region39: #{tpu_custom_call.1} parent=1 // pred_check_branch
      %43 = sbr.rel (0) target = $region41
    $region40: #{tpu_custom_call.1} parent=1 // pred_region
      %44 = dma.done [#allocation4], 16
    $region41: #{tpu_custom_call.1} parent=1 // pred_fallthru
      _
    %45 = sfence
    %s46 = sld [smem:[#allocation2]]
    %s47 = sld [smem:[#allocation2 + $0x1]]
    %v48 = vld [vmem:[%s1] sm:$0xff]
    %v49 = vld [vmem:[%s2] sm:$0xff]
    %v50 = vld [vmem:[%s3] sm:$0xff]
    %v51 = vld [vmem:[%s4] sm:$0xff]
    %v52 = vld [vmem:[%s5] sm:$0xff]
    %v53 = vld [vmem:[%s6] sm:$0x1]
    %v54 = vstv %s46
    %vm55 = vcmp.ge.f32.partialorder %v48, %v54
    %v56 = vsel %vm55, 1, 0
    %v57 = vcvt.s32.f32 %v56
    %v58 = vsub.f32 0.0, %v49
    %v59 = vadd.f32 %v58, 1.0
    %v60 = vlog2.pop %v59
    %v61 = vmul.f32 %v60, 0.6931472
    %v62 = vmul.f32 -0.5, %v58
    %v63 = vadd.f32 %v62, 1.0
    %v64 = vmul.f32 %v63, %v58
    %v65 = vand.u32 2147483647, %v58
    %vm66 = vcmp.lt.f32.partialorder %v65, 0.0004427343
    %v67 = vsel %vm66, %v64, %v61
    %v68 = vstv %s47
    %v69 = vsub.f32 %v67, %v68
    %v70 = vsel %vm55, 0.0, %v69
    %71 = vadd.xlane.f32.xlu0 %v70
    %v72 = vpop.xlane.xlu0 %71
    %v73 = vsub.f32 %v51, %v50
    %v74 = vsel %vm55, %v73, 0.0
    %v75 = vmul.f32 %v74, %v74
    %v77 = vlaneseq
    %v78 = vshrl.u32 %v77, 7
    %v79 = vsub.s32 0, %v78
    %v80 = vrot.slane %v53, %v79
    %v82 = vmul.f32 %v75, %v80
    %83 = vadd.xlane.f32.xlu0 %v82
    %v84 = vpop.xlane.xlu0 %83
    %v85 = vsel %vm55, %v52, 0.0
    %86 = vadd.xlane.f32.xlu0 %v85
    %v87 = vpop.xlane.xlu0 %86
    %v88 = vlog2.pop %v49
    %v89 = vmul.f32 %v88, 0.6931472
    %v90 = vsel %vm55, %v89, 0.0
    %91 = vadd.xlane.f32.xlu0 %v90
    %v92 = vpop.xlane.xlu0 %91
    %v93 = vld [vmem:[%s7] sm:$0xff]
    %v94 = vld [vmem:[%s7 + $0x8] sm:$0xff]
    %v95 = vld [vmem:[%s7 + $0x10] sm:$0xff]
    %v96 = vld [vmem:[%s7 + $0x18] sm:$0xff]
    %v97 = vld [vmem:[%s7 + $0x20] sm:$0xff]
    %v98 = vld [vmem:[%s7 + $0x28] sm:$0xff]
    %v99 = vld [vmem:[%s7 + $0x30] sm:$0xff]
    %v100 = vld [vmem:[%s7 + $0x38] sm:$0xff]
    %v101 = vld [vmem:[%s7 + $0x40] sm:$0xff]
    %v102 = vld [vmem:[%s7 + $0x48] sm:$0xff]
    %v103 = vld [vmem:[%s7 + $0x50] sm:$0xff]
    %v104 = vld [vmem:[%s7 + $0x58] sm:$0xff]
    %v105 = vld [vmem:[%s7 + $0x60] sm:$0xff]
    %v106 = vld [vmem:[%s7 + $0x68] sm:$0xff]
    %v107 = vld [vmem:[%s7 + $0x70] sm:$0xff]
    %v108 = vld [vmem:[%s7 + $0x78] sm:$0xff]
    %109 = vmatprep.subr.mxu0 0.0
    %110 = vmatpush1.msra.mxu0 %v93
    %111 = vmatprep.subr.mxu0 0.0
    %112 = vmatpush1.msra.mxu0 %v94
    %113 = vmatprep.subr.mxu0 0.0
    %114 = vmatpush1.msra.mxu0 %v95
    %115 = vmatprep.subr.mxu0 0.0
    %116 = vmatpush1.msra.mxu0 %v96
    %117 = vmatprep.subr.mxu0 0.0
    %118 = vmatpush1.msra.mxu0 %v97
    %119 = vmatprep.subr.mxu0 0.0
    %120 = vmatpush1.msra.mxu0 %v98
    %121 = vmatprep.subr.mxu0 0.0
    %122 = vmatpush1.msra.mxu0 %v99
    %123 = vmatprep.subr.mxu0 0.0
    %124 = vmatpush1.msra.mxu0 %v100
    %125 = vmatprep.subr.mxu0 0.0
    %126 = vmatpush1.msra.mxu0 %v101
    %127 = vmatprep.subr.mxu0 0.0
    %128 = vmatpush1.msra.mxu0 %v102
    %129 = vmatprep.subr.mxu0 0.0
    %130 = vmatpush1.msra.mxu0 %v103
    %131 = vmatprep.subr.mxu0 0.0
    %132 = vmatpush1.msra.mxu0 %v104
    %133 = vmatprep.subr.mxu0 0.0
    %134 = vmatpush1.msra.mxu0 %v105
    %135 = vmatprep.subr.mxu0 0.0
    %136 = vmatpush1.msra.mxu0 %v106
    %137 = vmatprep.subr.mxu0 0.0
    %138 = vmatpush1.msra.mxu0 %v107
    %139 = vmatprep.subr.mxu0 0.0
    %140 = vmatpush1.msra.mxu0 %v108
    %141 = vmatprep.subr.mxu0 0.0
    %142 = vmatpush1.msra.mxu0 0.0
    %143 = vmatprep.subr.mxu0 0.0
    %144 = vmatpush1.msra.mxu0 0.0
    %145 = vmatprep.subr.mxu0 0.0
    %146 = vmatpush1.msra.mxu0 0.0
    %147 = vmatprep.subr.mxu0 0.0
    %148 = vmatpush1.msra.mxu0 0.0
    %149 = vmatprep.subr.mxu0 0.0
    %150 = vmatpush1.msra.mxu0 0.0
    %151 = vmatprep.subr.mxu0 0.0
    %152 = vmatpush1.msra.mxu0 0.0
    %153 = vmatprep.subr.mxu0 0.0
    %154 = vmatpush1.msra.mxu0 0.0
    %155 = vmatprep.subr.mxu0 0.0
    %156 = vmatpush1.msra.mxu0 0.0
    %157 = vmatprep.subr.mxu0 0.0
    %158 = vmatpush1.msra.mxu0 0.0
    %159 = vmatprep.subr.mxu0 0.0
    %160 = vmatpush1.msra.mxu0 0.0
    %161 = vmatprep.subr.mxu0 0.0
    %162 = vmatpush1.msra.mxu0 0.0
    %163 = vmatprep.subr.mxu0 0.0
    %164 = vmatpush1.msra.mxu0 0.0
    %165 = vmatprep.subr.mxu0 0.0
    %166 = vmatpush1.msra.mxu0 0.0
    %167 = vmatprep.subr.mxu0 0.0
    %168 = vmatpush1.msra.mxu0 0.0
    %169 = vmatprep.subr.mxu0 0.0
    %170 = vmatpush1.msra.mxu0 0.0
    %171 = vmatprep.subr.mxu0 0.0
    %172 = vmatpush1.msra.mxu0 0.0
    %173 = vmatprep.mubr.f32.mxu0 0.0
    %174 = vmatmul.mubr.f32.gmra.mrb[0].mxu0 %v74
    %v175 = vpop.f32.mrb[0].mxu0
    %v176 = vadd.f32 0.0, %v175
    %v177 = vpop.f32.mrb[0].mxu0
    %178 = vdwg.mxu0
    %v179 = vld [vmem:[%s8] sm:$0xff]
    %v180 = vld [vmem:[%s8 + $0x8] sm:$0xff]
    %v181 = vld [vmem:[%s8 + $0x10] sm:$0xff]
    %v182 = vld [vmem:[%s8 + $0x18] sm:$0xff]
    %v183 = vld [vmem:[%s8 + $0x20] sm:$0xff]
    %v184 = vld [vmem:[%s8 + $0x28] sm:$0xff]
    %v185 = vld [vmem:[%s8 + $0x30] sm:$0xff]
    %v186 = vld [vmem:[%s8 + $0x38] sm:$0xff]
    %v187 = vld [vmem:[%s8 + $0x40] sm:$0xff]
    %v188 = vld [vmem:[%s8 + $0x48] sm:$0xff]
    %v189 = vld [vmem:[%s8 + $0x50] sm:$0xff]
    %v190 = vld [vmem:[%s8 + $0x58] sm:$0xff]
    %v191 = vld [vmem:[%s8 + $0x60] sm:$0xff]
    %v192 = vld [vmem:[%s8 + $0x68] sm:$0xff]
    %v193 = vld [vmem:[%s8 + $0x70] sm:$0xff]
    %v194 = vld [vmem:[%s8 + $0x78] sm:$0xff]
    %195 = vmatprep.subr.mxu0 0.0
    %196 = vmatpush1.msra.mxu0 %v179
    %197 = vmatprep.subr.mxu0 0.0
    %198 = vmatpush1.msra.mxu0 %v180
    %199 = vmatprep.subr.mxu0 0.0
    %200 = vmatpush1.msra.mxu0 %v181
    %201 = vmatprep.subr.mxu0 0.0
    %202 = vmatpush1.msra.mxu0 %v182
    %203 = vmatprep.subr.mxu0 0.0
    %204 = vmatpush1.msra.mxu0 %v183
    %205 = vmatprep.subr.mxu0 0.0
    %206 = vmatpush1.msra.mxu0 %v184
    %207 = vmatprep.subr.mxu0 0.0
    %208 = vmatpush1.msra.mxu0 %v185
    %209 = vmatprep.subr.mxu0 0.0
    %210 = vmatpush1.msra.mxu0 %v186
    %211 = vmatprep.subr.mxu0 0.0
    %212 = vmatpush1.msra.mxu0 %v187
    %213 = vmatprep.subr.mxu0 0.0
    %214 = vmatpush1.msra.mxu0 %v188
    %215 = vmatprep.subr.mxu0 0.0
    %216 = vmatpush1.msra.mxu0 %v189
    %217 = vmatprep.subr.mxu0 0.0
    %218 = vmatpush1.msra.mxu0 %v190
    %219 = vmatprep.subr.mxu0 0.0
    %220 = vmatpush1.msra.mxu0 %v191
    %221 = vmatprep.subr.mxu0 0.0
    %222 = vmatpush1.msra.mxu0 %v192
    %223 = vmatprep.subr.mxu0 0.0
    %224 = vmatpush1.msra.mxu0 %v193
    %225 = vmatprep.subr.mxu0 0.0
    %226 = vmatpush1.msra.mxu0 %v194
    %227 = vmatprep.subr.mxu0 0.0
    %228 = vmatpush1.msra.mxu0 0.0
    %229 = vmatprep.subr.mxu0 0.0
    %230 = vmatpush1.msra.mxu0 0.0
    %231 = vmatprep.subr.mxu0 0.0
    %232 = vmatpush1.msra.mxu0 0.0
    %233 = vmatprep.subr.mxu0 0.0
    %234 = vmatpush1.msra.mxu0 0.0
    %235 = vmatprep.subr.mxu0 0.0
    %236 = vmatpush1.msra.mxu0 0.0
    %237 = vmatprep.subr.mxu0 0.0
    %238 = vmatpush1.msra.mxu0 0.0
    %239 = vmatprep.subr.mxu0 0.0
    %240 = vmatpush1.msra.mxu0 0.0
    %241 = vmatprep.subr.mxu0 0.0
    %242 = vmatpush1.msra.mxu0 0.0
    %243 = vmatprep.subr.mxu0 0.0
    %244 = vmatpush1.msra.mxu0 0.0
    %245 = vmatprep.subr.mxu0 0.0
    %246 = vmatpush1.msra.mxu0 0.0
    %247 = vmatprep.subr.mxu0 0.0
    %248 = vmatpush1.msra.mxu0 0.0
    %249 = vmatprep.subr.mxu0 0.0
    %250 = vmatpush1.msra.mxu0 0.0
    %251 = vmatprep.subr.mxu0 0.0
    %252 = vmatpush1.msra.mxu0 0.0
    %253 = vmatprep.subr.mxu0 0.0
    %254 = vmatpush1.msra.mxu0 0.0
    %255 = vmatprep.subr.mxu0 0.0
    %256 = vmatpush1.msra.mxu0 0.0
    %257 = vmatprep.subr.mxu0 0.0
    %258 = vmatpush1.msra.mxu0 0.0
    %259 = vmatprep.mubr.f32.mxu0 0.0
    %260 = vmatmul.mubr.f32.gmra.mrb[0].mxu0 %v57
    %v261 = vpop.f32.mrb[0].mxu0
    %v262 = vadd.f32 0.0, %v261
    %v263 = vpop.f32.mrb[0].mxu0
    %264 = vdwg.mxu0
    %266 = vrot.lane.b32.xlu0 %v176, 4
    %v267 = vpop.permute.xlu0 %266
    %270 = vrot.lane.b32.xlu0 %v262, 8
    %v271 = vpop.permute.xlu0 %270
    %vm273 = vcmask 7168
    %v274 = vsel %vm273, %v72, %v84
    %vm275 = vcmask 15360
    %v276 = vsel %vm275, %v274, %v87
    %vm277 = vcmask 23552
    %v278 = vsel %vm277, %v276, %v92
    %vm279 = vcmask 31744
    %v280 = vsel %vm279, %v278, %v267
    %vm281 = vcmask 64512
    %v282 = vsel %vm281, %v280, %v271
    %vm283 = vcmask 211968
    %v284 = vsel %vm283, %v282, 0.0
    %285 = vst [vmem:[#allocation5] sm:$0xff] %v284
    // Predicated region
    $region42: #{tpu_custom_call.1} parent=1 // pred_check
      _
    $region43: #{tpu_custom_call.1} parent=1 // pred_check_branch
      %287 = sbr.rel (0) target = $region45
    $region44: #{tpu_custom_call.1} parent=1 // pred_region
      %s289 = ssub.s32 128, 128
      %290 = vsyncadd [#allocation3], %s289
      %s292 = sshll.u32 [#allocation5], 4
      %s293 = int_to_ptr.vmem [resolvable:$true] %s292
      %295 = dma.vmem_to_hbm [thread:$0]  %s293, 128, %s9, [#allocation3]
    $region45: #{tpu_custom_call.1} parent=1 // pred_fallthru
      _
    // Predicated region
    $region46: #{tpu_custom_call.1} parent=1 // pred_check
      _
    $region47: #{tpu_custom_call.1} parent=1 // pred_check_branch
      %297 = sbr.rel (0) target = $region49
    $region48: #{tpu_custom_call.1} parent=1 // pred_region
      %298 = dma.done [#allocation3], 128
    $region49: #{tpu_custom_call.1} parent=1 // pred_fallthru
      _
    %299 = vsyncpa [#allocation3], 1
    %300 = vsyncpa [#allocation4], 1

</llo_original>
